<compile_context>
chip_gen: v7x
topology: tpu7x:2x2x1
jax: 0.10.0
libtpu: 0.0.40
codegen_flags: <defaults>
</compile_context>

<pallas_src>
from typing import NamedTuple

import jax
import jax.numpy as jnp
from jax.experimental import pallas as pl
from jax.experimental.pallas import tpu as pltpu


def _round_up(x, m):
    return ((x + m - 1) // m) * m


def _pick_tile(dim, align, max_tile, waste_frac=0.10):
    """Largest tile (multiple of `align`, <= max_tile) whose padded size stays
    within `waste_frac` of the minimum achievable padding."""
    full = _round_up(dim, align)
    if full <= max_tile:
        return full
    min_pad = full  # padding achievable with tile == align
    threshold = max(min_pad, int(dim * (1.0 + waste_frac)))
    best = align
    t = align
    while t <= max_tile:
        if _round_up(dim, t) <= threshold:
            best = t
        t += align
    return best


# -----------------------------------------------------------------------------
# Kernels
# -----------------------------------------------------------------------------
def _fused_kernel_single_k(x_ref, w_ref, shift_ref, o_ref):
    # Single uninterrupted contraction: matmul + shift + ReLU.
    y = jnp.dot(x_ref[...], w_ref[...], preferred_element_type=jnp.float32)
    o_ref[...] = jnp.maximum(y + shift_ref[...], 0.0).astype(o_ref.dtype)


def _fused_kernel_k_grid(x_ref, w_ref, shift_ref, o_ref):
    # Output is f32 and resident across k (its index_map ignores k), so we
    # accumulate directly into o_ref — no separate VMEM scratch.
    k = pl.program_id(2)

    @pl.when(k == 0)
    def _():
        o_ref[...] = jnp.zeros_like(o_ref)

    o_ref[...] += jnp.dot(x_ref[...], w_ref[...],
                          preferred_element_type=jnp.float32)

    @pl.when(k == pl.num_programs(2) - 1)
    def _():
        o_ref[...] = jnp.maximum(o_ref[...] + shift_ref[...], 0.0)


# -----------------------------------------------------------------------------
# One-time parameter preparation (fold + pad + cast) — hoisted out of forward.
# -----------------------------------------------------------------------------
class LinearMappingParams(NamedTuple):
    w_fold: jax.Array   # (K_pad, N_pad), compute dtype (bf16 by default)
    shift: jax.Array    # (1, N_pad) float32
    n_in: int
    n_out: int
    tn: int             # output-feature tile (multiple of 128)
    tk: int             # reduction tile; tk == K_pad means K axis collapsed


def prepare_linear_mapping_params(
    w, b, gamma, beta, running_mean, running_var, *,
    eps=1e-5, compute_dtype=jnp.bfloat16,
    max_bm=256, max_tn=512, max_tk=2048,
    vmem_panel_budget=24 * 1024 * 1024,   # conservative for v7x (64 MiB VMEM)
):
    """Fold Linear bias + eval-mode BatchNorm into the weights once.

    y = (x@W + b - mean) * scale + beta,  scale = gamma / sqrt(var + eps)
      = x @ (W * scale) + ((b - mean) * scale + beta)
    """
    n_in, n_out = w.shape

    scale = gamma.astype(jnp.float32) / jnp.sqrt(
        running_var.astype(jnp.float32) + eps)
    w_fold = w.astype(jnp.float32) * scale[None, :]                # f32 fold
    shift = ((b.astype(jnp.float32) - running_mean.astype(jnp.float32)) * scale
             + beta.astype(jnp.float32))

    tn = _pick_tile(n_out, 128, max_tn)
    n_pad = _round_up(n_out, tn)

    in_bytes = jnp.dtype(compute_dtype).itemsize
    k_full = _round_up(n_in, 128)
    # Collapse the reduction axis if double-buffered x/W panels plus the f32
    # output tiles fit the VMEM budget at the largest batch tile.
    collapse_bytes = (2 * (max_bm * k_full + k_full * tn) * in_bytes
                      + 2 * max_bm * tn * 4)
    if collapse_bytes <= vmem_panel_budget:
        tk = k_full
    else:
        tk = _pick_tile(n_in, 128, max_tk)
    k_pad = _round_up(n_in, tk)

    w_fold = jnp.pad(w_fold, ((0, k_pad - n_in), (0, n_pad - n_out)))
    shift = jnp.pad(shift, (0, n_pad - n_out)).reshape(1, n_pad)

    return LinearMappingParams(
        w_fold=w_fold.astype(compute_dtype),   # cast only at the boundary
        shift=shift,                            # keep shift in f32
        n_in=n_in, n_out=n_out, tn=tn, tk=tk,
    )


# -----------------------------------------------------------------------------
# Per-call forward
# -----------------------------------------------------------------------------
def linear_mapping_forward(x, params: LinearMappingParams, *, max_bm=256):
    """Eval-mode forward of LinearMapping. x: [B, N_in] float32."""
    B, n_in = x.shape
    assert n_in == params.n_in, "input feature dim mismatch"

    k_pad, n_pad = params.w_fold.shape
    tn, tk = params.tn, params.tk
    compute_dtype = params.w_fold.dtype
    in_bytes = jnp.dtype(compute_dtype).itemsize
    sublane = 16 if in_bytes == 2 else 8

    bm = _pick_tile(B, sublane, max_bm)
    b_pad = _round_up(B, bm)

    grid_i = b_pad // bm
    grid_j = n_pad // tn
    grid_k = k_pad // tk

    # v7x has 2 TensorCores; make sure the "parallel" grid has >= 2 tiles
    # when that is cheap to arrange (no effect on v5e/v6e correctness).
    if grid_i * grid_j == 1:
        if tn >= 256:
            tn //= 2
            grid_j = n_pad // tn
        elif bm >= 2 * sublane:
            bm //= 2
            grid_i = b_pad // bm

    x_p = x
    if (b_pad, k_pad) != (B, n_in):
        x_p = jnp.pad(x_p, ((0, b_pad - B), (0, k_pad - n_in)))
    x_p = x_p.astype(compute_dtype)

    # Advisory cost: x is re-read grid_j times, W re-read grid_i times.
    cost = pl.CostEstimate(
        flops=2 * b_pad * k_pad * n_pad,
        transcendentals=0,
        bytes_accessed=(in_bytes * (b_pad * k_pad * grid_j
                                    + k_pad * n_pad * grid_i)
                        + 4 * b_pad * n_pad),
    )

    # Double-buffered input panels + double-buffered f32 output + shift.
    vmem_need = (2 * (bm * tk + tk * tn) * in_bytes
                 + 2 * bm * tn * 4 + 2 * tn * 4)
    vmem_limit = int(min(max(2 * vmem_need, 32 << 20), 48 << 20))

    if grid_k == 1:
        kernel = _fused_kernel_single_k
        grid = (grid_i, grid_j)
        in_specs = [
            pl.BlockSpec((bm, tk), lambda i, j: (i, 0)),   # x
            pl.BlockSpec((tk, tn), lambda i, j: (0, j)),   # W' (folded)
            pl.BlockSpec((1, tn), lambda i, j: (0, j)),    # shift
        ]
        out_specs = pl.BlockSpec((bm, tn), lambda i, j: (i, j))
        dim_sem = ("parallel", "parallel")
    else:
        kernel = _fused_kernel_k_grid
        grid = (grid_i, grid_j, grid_k)
        in_specs = [
            pl.BlockSpec((bm, tk), lambda i, j, k: (i, k)),
            pl.BlockSpec((tk, tn), lambda i, j, k: (k, j)),
            pl.BlockSpec((1, tn), lambda i, j, k: (0, j)),
        ]
        out_specs = pl.BlockSpec((bm, tn), lambda i, j, k: (i, j))
        dim_sem = ("parallel", "parallel", "arbitrary")

    out_padded = pl.pallas_call(
        kernel,
        out_shape=jax.ShapeDtypeStruct((b_pad, n_pad), jnp.float32),
        grid_spec=pltpu.PrefetchScalarGridSpec(
            num_scalar_prefetch=0,
            grid=grid,
            in_specs=in_specs,
            out_specs=out_specs,
        ),
        compiler_params=pltpu.CompilerParams(
            dimension_semantics=dim_sem,
            vmem_limit_bytes=vmem_limit,
        ),
        cost_estimate=cost,
    )(x_p, params.w_fold, params.shift)

    return out_padded[:B, :params.n_out]


def _reference(x, w, b, gamma, beta, running_mean, running_var, eps=1e-5):
    y = x @ w + b
    y = (y - running_mean) / jnp.sqrt(running_var + eps) * gamma + beta
    return jnp.maximum(y, 0.0)


if __name__ == "__main__":
    n_in, n_out, batch = 32, 64, 8

    key = jax.random.PRNGKey(0)
    k_x, k_w, k_b, k_g, k_be, k_m, k_v = jax.random.split(key, 7)

    x = jax.random.normal(k_x, (batch, n_in), dtype=jnp.float32)

    # Deterministic synthetic parameters (shapes from nn.Linear / nn.BatchNorm1d).
    w = jax.random.normal(k_w, (n_in, n_out), dtype=jnp.float32) * (1.0 / n_in ** 0.5)
    b = jax.random.normal(k_b, (n_out,), dtype=jnp.float32) * 0.1
    gamma = 1.0 + 0.1 * jax.random.normal(k_g, (n_out,), dtype=jnp.float32)
    beta = 0.1 * jax.random.normal(k_be, (n_out,), dtype=jnp.float32)
    running_mean = 0.1 * jax.random.normal(k_m, (n_out,), dtype=jnp.float32)
    running_var = jnp.abs(jax.random.normal(k_v, (n_out,), dtype=jnp.float32)) + 0.5

    # One-time parameter prep (fold + pad + bf16 cast), reused across calls.
    params = prepare_linear_mapping_params(
        w, b, gamma, beta, running_mean, running_var)

    out = linear_mapping_forward(x, params)
    out = jax.block_until_ready(out)

    ref = _reference(x, w, b, gamma, beta, running_mean, running_var)
    assert out.shape == (batch, n_out)
    # bf16 inputs / f32 accumulate: widen tolerance vs the pure-f32 reference.
    assert jnp.allclose(out, ref, atol=3e-2, rtol=3e-2), "mismatch vs reference"

    print("KERNEL_OK")
</pallas_src>

<mosaic_0001>
module attributes {stable_mosaic.version = 11 : i64} {
  func.func @_fused_kernel_single_k(%arg0: i32, %arg1: i32, %arg2: memref<16x128xbf16, #tpu.memory_space<vmem>>, %arg3: memref<128x128xbf16, #tpu.memory_space<vmem>>, %arg4: memref<1x128xf32, #tpu.memory_space<vmem>>, %arg5: memref<16x128xf32, #tpu.memory_space<vmem>>) attributes {dimension_semantics = [#tpu.dimension_semantics<parallel>, #tpu.dimension_semantics<parallel>], iteration_bounds = array<i64: 1, 1>, scalar_prefetch = 0 : i64, scratch_operands = 0 : i64, tpu.core_type = #tpu.core_type<tc>, window_params = [{transform_indices = @transform_0, window_bounds = array<i64: 16, 128>}, {transform_indices = @transform_1, window_bounds = array<i64: 128, 128>}, {transform_indices = @transform_2, window_bounds = array<i64: 1, 128>}, {transform_indices = @transform_3, window_bounds = array<i64: 16, 128>}]} {
    %c0 = arith.constant 0 : index
    %c0_0 = arith.constant 0 : index
    %0 = vector.load %arg2[%c0, %c0_0] : memref<16x128xbf16, #tpu.memory_space<vmem>>, vector<16x128xbf16>
    %c0_1 = arith.constant 0 : index
    %c0_2 = arith.constant 0 : index
    %1 = vector.load %arg3[%c0_1, %c0_2] : memref<128x128xbf16, #tpu.memory_space<vmem>>, vector<128x128xbf16>
    %cst = arith.constant dense<0.000000e+00> : vector<16x128xf32>
    %2 = tpu.matmul %0, %1, %cst {dimension_numbers = #tpu.dot_dimension_numbers<[1], [0], [0], [1], [0, 0, 1, 1], [], []>} : vector<16x128xbf16>, vector<128x128xbf16>, vector<16x128xf32> -> vector<16x128xf32>
    %c0_3 = arith.constant 0 : index
    %c0_4 = arith.constant 0 : index
    %3 = vector.load %arg4[%c0_3, %c0_4] : memref<1x128xf32, #tpu.memory_space<vmem>>, vector<1x128xf32>
    %4 = vector.broadcast %3 : vector<1x128xf32> to vector<16x128xf32>
    %5 = arith.addf %2, %4 : vector<16x128xf32>
    %cst_5 = arith.constant 0.000000e+00 : f32
    %6 = vector.broadcast %cst_5 : f32 to vector<16x128xf32>
    %7 = arith.maximumf %5, %6 : vector<16x128xf32>
    %c0_6 = arith.constant 0 : index
    %c0_7 = arith.constant 0 : index
    %8 = vector.load %arg5[%c0_6, %c0_7] : memref<16x128xf32, #tpu.memory_space<vmem>>, vector<16x128xf32>
    tpu.vector_store %arg5[%c0_6, %c0_7], %7 {strides = array<i32>} : memref<16x128xf32, #tpu.memory_space<vmem>>, vector<16x128xf32>,
    return
  }
  func.func @transform_0(%arg0: i32, %arg1: i32) -> (i32, i32) {
    %c0_i32 = arith.constant 0 : i32
    %c0_i32_0 = arith.constant 0 : i32
    return %arg0, %c0_i32 : i32, i32
  }
  func.func @transform_1(%arg0: i32, %arg1: i32) -> (i32, i32) {
    %c0_i32 = arith.constant 0 : i32
    %c0_i32_0 = arith.constant 0 : i32
    return %c0_i32, %arg1 : i32, i32
  }
  func.func @transform_2(%arg0: i32, %arg1: i32) -> (i32, i32) {
    %c0_i32 = arith.constant 0 : i32
    %c0_i32_0 = arith.constant 0 : i32
    return %c0_i32, %arg1 : i32, i32
  }
  func.func @transform_3(%arg0: i32, %arg1: i32) -> (i32, i32) {
    %c0_i32 = arith.constant 0 : i32
    return %arg0, %arg1 : i32, i32
  }
}

</mosaic_0001>

<llo_original>
// kernel: tpu_custom_call.1
$region0: #{tpu_custom_call.1}
  #allocation0 [shape = 'u32[]', space=smem, size = 0x4, offset = 0x4, fixed_abs, tag = 'smem constant byte address 0x4 - core index']
  #allocation1 [shape = 'u32[144,128]{1,0:T(1,128)}', space=vmem, size = 0x12000, scoped, tag = 'internal scratch']
  %s0 = inlined_call_operand.hbm [shape: bf16[16,128], index: 0, kind: input, shape index: {}]
  %s1 = inlined_call_operand.hbm [shape: bf16[128,128], index: 1, kind: input, shape index: {}]
  %s2 = inlined_call_operand.vmem [shape: f32[1,128], index: 2, kind: input, shape index: {}]
  %s3 = inlined_call_operand.hbm [shape: f32[16,128], index: 3, kind: output, shape index: {}]
  %s4 = sld [smem:[#allocation0]]
  $region30: #{tpu_custom_call.1} parent=0
    _
  %s6 = ssub.s32 1, %s4
  %s7 = scalar_select 0, %s6, %s4
  $region1: #{tpu_custom_call.1} parent=0
    #allocation2 [shape = 'u8[4096]{0}', space=vmem, size = 0x1000, scoped, tag = 'input window, operand 0, single buffered']
    #allocation3 [shape = 's32[1]{0}', space=sflag, size = 0x4, scoped, tag = 'scoped memory for tpu_custom_call.1']
    #allocation4 [shape = 's32[1]{0}', space=sflag, size = 0x4, scoped, tag = 'scoped memory for tpu_custom_call.1']
    #allocation5 [shape = 'u8[32768]{0}', space=vmem, size = 0x8000, scoped, tag = 'input window, operand 1, single buffered']
    #allocation6 [shape = 's32[1]{0}', space=sflag, size = 0x4, scoped, tag = 'scoped memory for tpu_custom_call.1']
    #allocation7 [shape = 'u8[8192]{0}', space=vmem, size = 0x2000, scoped, tag = 'output window, operand 0, single buffered']
    %8 = vsyncpa [#allocation3], 0
    %9 = vsyncpa [#allocation6], 0
    %10 = vsyncpa [#allocation4], 0
    // Predicated region
    $region2: #{tpu_custom_call.1} parent=1 // pred_check
      _
    $region3: #{tpu_custom_call.1} parent=1 // pred_check_branch
      %12 = sbr.rel (0) target = $region5
    $region4: #{tpu_custom_call.1} parent=1 // pred_region
      %s14 = ssub.s32 128, 128
      %15 = vsyncadd [#allocation3], %s14
      %s16 = sshll.u32 [#allocation2], 4
      %s17 = int_to_ptr.vmem [resolvable:$true] %s16
      %22 = dma.hbm_to_vmem [thread:$0]  %s0, 128, %s17, [#allocation3], 64, 64, 4
    $region5: #{tpu_custom_call.1} parent=1 // pred_fallthru
      _
    // Predicated region
    $region6: #{tpu_custom_call.1} parent=1 // pred_check
      _
    $region7: #{tpu_custom_call.1} parent=1 // pred_check_branch
      %24 = sbr.rel (0) target = $region9
    $region8: #{tpu_custom_call.1} parent=1 // pred_region
      %s26 = ssub.s32 1024, 1024
      %27 = vsyncadd [#allocation6], %s26
      %s28 = sshll.u32 [#allocation5], 4
      %s29 = int_to_ptr.vmem [resolvable:$true] %s28
      %34 = dma.hbm_to_vmem [thread:$0]  %s1, 1024, %s29, [#allocation6], 64, 64, 4
    $region9: #{tpu_custom_call.1} parent=1 // pred_fallthru
      _
    // Predicated region
    $region10: #{tpu_custom_call.1} parent=1 // pred_check
      _
    $region11: #{tpu_custom_call.1} parent=1 // pred_check_branch
      %36 = sbr.rel (0) target = $region13
    $region12: #{tpu_custom_call.1} parent=1 // pred_region
      _
    $region13: #{tpu_custom_call.1} parent=1 // pred_fallthru
      _
    // Predicated region
    $region14: #{tpu_custom_call.1} parent=1 // pred_check
      _
    $region15: #{tpu_custom_call.1} parent=1 // pred_check_branch
      %38 = sbr.rel (0) target = $region17
    $region16: #{tpu_custom_call.1} parent=1 // pred_region
      %39 = dma.done [#allocation3], 128
    $region17: #{tpu_custom_call.1} parent=1 // pred_fallthru
      _
    // Predicated region
    $region18: #{tpu_custom_call.1} parent=1 // pred_check
      _
    $region19: #{tpu_custom_call.1} parent=1 // pred_check_branch
      %41 = sbr.rel (0) target = $region21
    $region20: #{tpu_custom_call.1} parent=1 // pred_region
      %42 = dma.done [#allocation6], 1024
    $region21: #{tpu_custom_call.1} parent=1 // pred_fallthru
      _
    %v44 = vld [vmem:[#allocation2] sm:$0xf]
    %v45 = vld [vmem:[#allocation2 + $0x4] sm:$0xf]
    %v46 = vld [vmem:[#allocation5] sm:$0xf]
    %v47 = vld [vmem:[#allocation5 + $0x4] sm:$0xf]
    %v48 = vld [vmem:[#allocation5 + $0x8] sm:$0xf]
    %v49 = vld [vmem:[#allocation5 + $0xc] sm:$0xf]
    %v50 = vld [vmem:[#allocation5 + $0x10] sm:$0xf]
    %v51 = vld [vmem:[#allocation5 + $0x14] sm:$0xf]
    %v52 = vld [vmem:[#allocation5 + $0x18] sm:$0xf]
    %v53 = vld [vmem:[#allocation5 + $0x1c] sm:$0xf]
    %v54 = vld [vmem:[#allocation5 + $0x20] sm:$0xf]
    %v55 = vld [vmem:[#allocation5 + $0x24] sm:$0xf]
    %v56 = vld [vmem:[#allocation5 + $0x28] sm:$0xf]
    %v57 = vld [vmem:[#allocation5 + $0x2c] sm:$0xf]
    %v58 = vld [vmem:[#allocation5 + $0x30] sm:$0xf]
    %v59 = vld [vmem:[#allocation5 + $0x34] sm:$0xf]
    %v60 = vld [vmem:[#allocation5 + $0x38] sm:$0xf]
    %v61 = vld [vmem:[#allocation5 + $0x3c] sm:$0xf]
    %v62 = vld [vmem:[%s2] sm:$0x1]
    %v64 = vlaneseq
    %v65 = vshrl.u32 %v64, 7
    %v66 = vsub.s32 0, %v65
    %v67 = vrot.slane %v62, %v66
    %v71 = vunpack.c.l.b16 %v44
    %v72 = vunpack.c.l.b16 %v45
    %v73 = vpack.c.b16 %v72, %v71
    %v91 = vunpack.c.l.b16 %v46
    %v92 = vunpack.c.l.b16 %v47
    %v93 = vunpack.c.l.b16 %v48
    %v94 = vunpack.c.l.b16 %v49
    %v95 = vunpack.c.l.b16 %v50
    %v96 = vunpack.c.l.b16 %v51
    %v97 = vunpack.c.l.b16 %v52
    %v98 = vunpack.c.l.b16 %v53
    %v99 = vunpack.c.l.b16 %v54
    %v100 = vunpack.c.l.b16 %v55
    %v101 = vunpack.c.l.b16 %v56
    %v102 = vunpack.c.l.b16 %v57
    %v103 = vunpack.c.l.b16 %v58
    %v104 = vunpack.c.l.b16 %v59
    %v105 = vunpack.c.l.b16 %v60
    %v106 = vunpack.c.l.b16 %v61
    %v107 = vpack.c.b16 %v92, %v91
    %v108 = vpack.c.b16 %v94, %v93
    %v109 = vpack.c.b16 %v96, %v95
    %v110 = vpack.c.b16 %v98, %v97
    %v111 = vpack.c.b16 %v100, %v99
    %v112 = vpack.c.b16 %v102, %v101
    %v113 = vpack.c.b16 %v104, %v103
    %v114 = vpack.c.b16 %v106, %v105
    %123 = vmatprep.subr.bf16.mxu0 0
    %124 = vmatpush1.bf16.msra.mxu0 %v107
    %125 = vmatprep.subr.bf16.mxu0 0
    %126 = vmatpush1.bf16.msra.mxu0 %v108
    %127 = vmatprep.subr.bf16.mxu0 0
    %128 = vmatpush1.bf16.msra.mxu0 %v109
    %129 = vmatprep.subr.bf16.mxu0 0
    %130 = vmatpush1.bf16.msra.mxu0 %v110
    %131 = vmatprep.subr.bf16.mxu0 0
    %132 = vmatpush1.bf16.msra.mxu0 %v111
    %133 = vmatprep.subr.bf16.mxu0 0
    %134 = vmatpush1.bf16.msra.mxu0 %v112
    %135 = vmatprep.subr.bf16.mxu0 0
    %136 = vmatpush1.bf16.msra.mxu0 %v113
    %137 = vmatprep.subr.bf16.mxu0 0
    %138 = vmatpush1.bf16.msra.mxu0 %v114
    %139 = vmatprep.subr.bf16.mxu0 0
    %140 = vmatpush1.bf16.msra.mxu0 0
    %141 = vmatprep.subr.bf16.mxu0 0
    %142 = vmatpush1.bf16.msra.mxu0 0
    %143 = vmatprep.subr.bf16.mxu0 0
    %144 = vmatpush1.bf16.msra.mxu0 0
    %145 = vmatprep.subr.bf16.mxu0 0
    %146 = vmatpush1.bf16.msra.mxu0 0
    %147 = vmatprep.subr.bf16.mxu0 0
    %148 = vmatpush1.bf16.msra.mxu0 0
    %149 = vmatprep.subr.bf16.mxu0 0
    %150 = vmatpush1.bf16.msra.mxu0 0
    %151 = vmatprep.subr.bf16.mxu0 0
    %152 = vmatpush1.bf16.msra.mxu0 0
    %153 = vmatprep.subr.bf16.mxu0 0
    %154 = vmatpush1.bf16.msra.mxu0 0
    %155 = vmatprep.mubr.bf16.mxu0 0
    %156 = vmatmul.mubr.bf16.gmra.mrb[0].mxu0 %v73
    %v157 = vpop.f32.mrb[0].mxu0
    %v158 = vadd.f32 %v67, %v157
    %v159 = vpop.f32.mrb[0].mxu0
    %v160 = vpop.f32.mrb[0].mxu0
    %v161 = vadd.f32 %v67, %v160
    %v162 = vpop.f32.mrb[0].mxu0
    %163 = vdwg.mxu0
    %v164 = vmax.f32 %v158, 0.0
    %v165 = vmax.f32 %v161, 0.0
    %166 = vst [vmem:[#allocation7] sm:$0xff] %v164
    %167 = vst [vmem:[#allocation7 + $0x8] sm:$0xff] %v165
    // Predicated region
    $region22: #{tpu_custom_call.1} parent=1 // pred_check
      _
    $region23: #{tpu_custom_call.1} parent=1 // pred_check_branch
      %169 = sbr.rel (0) target = $region25
    $region24: #{tpu_custom_call.1} parent=1 // pred_region
      %s171 = ssub.s32 256, 256
      %172 = vsyncadd [#allocation4], %s171
      %s173 = sshll.u32 [#allocation7], 4
      %s174 = int_to_ptr.vmem [resolvable:$true] %s173
      %179 = dma.vmem_to_hbm [thread:$0]  %s174, 256, %s3, [#allocation4], 128, 128, 8
    $region25: #{tpu_custom_call.1} parent=1 // pred_fallthru
      _
    // Predicated region
    $region26: #{tpu_custom_call.1} parent=1 // pred_check
      _
    $region27: #{tpu_custom_call.1} parent=1 // pred_check_branch
      %181 = sbr.rel (0) target = $region29
    $region28: #{tpu_custom_call.1} parent=1 // pred_region
      %182 = dma.done [#allocation4], 256
    $region29: #{tpu_custom_call.1} parent=1 // pred_fallthru
      _
    %183 = vsyncpa [#allocation3], 1
    %184 = vsyncpa [#allocation6], 1
    %185 = vsyncpa [#allocation4], 1

</llo_original>
